<compile_context>
chip_gen: v5e
topology: v5e:2x2
jax: 0.10.0
libtpu: 0.0.40
codegen_flags: <defaults>
</compile_context>

<pallas_src>
import functools

import jax
import jax.numpy as jnp
import numpy as np
from jax.experimental import pallas as pl
from jax.experimental.pallas import tpu as pltpu


# ------------------------------------------------------------------------------ kernel
def _gcn_kernel(x_ref, a_ref, w1bd_ref, b1_ref, w2bd_ref, m_ref, bout_ref,
                o_ref, xa_acc):
    """Grid = (batch tiles, node-contraction tiles).

    x_ref    : (bt*c_in, tk)       batch-fused, feature-major x slab (compute dtype)
    a_ref    : (tk, N)             node tile of A_hat.T
    w1bd_ref : (bt*2d, bt*c_in)    block-diag(bt copies of W1.T)
    b1_ref   : (bt*2d, 1)          conv1 bias, tiled per batch
    w2bd_ref : (bt*c_in, bt*2d)    block-diag(bt copies of W2.T)
    m_ref    : (N, d_model)        M = A_hat.T @ Wl.T (second A_hat matmul folded)
    bout_ref : (bt*c_in, d_model)  fused conv2-bias + linear-bias (f32)
    o_ref    : (bt*c_in, d_model)  output slab (f32)
    xa_acc   : (bt*c_in, N) f32    accumulator for x @ A_hat.T across node tiles
    """
    k = pl.program_id(1)
    cdt = a_ref.dtype                                   # matmul operand dtype (bf16/f32)

    @pl.when(k == 0)
    def _init():
        xa_acc[...] = jnp.zeros_like(xa_acc)

    # Heavy N-contraction on only bt*c_in rows (re-associated); f32 accumulation.
    xa_acc[...] += jnp.dot(x_ref[...], a_ref[...],
                           preferred_element_type=jnp.float32)

    @pl.when(k == pl.num_programs(1) - 1)
    def _finalize():
        xa = xa_acc[...].astype(cdt)                    # (bt*c_in, N)
        # conv1 for all bt batches in one small-K matmul (block-diag weights); the
        # small-K dots stay in the compute dtype (no f32 round-trip / recast).
        h = jnp.dot(w1bd_ref[...], xa) + b1_ref[...]    # (bt*2d, N)
        h = jnp.where(h > 0, h, 0.01 * h)               # leaky_relu(0.01)
        # TODO(synk): dropout is identity (inference mode); stochastic masking not done.
        g = jnp.dot(w2bd_ref[...], h)                   # (bt*c_in, N)
        # conv2's A_hat matmul and the node -> d_model Linear are folded into M.
        out = jnp.dot(g, m_ref[...], preferred_element_type=jnp.float32)
        o_ref[...] = (out + bout_ref[...]).astype(o_ref.dtype)   # single store per step


# ----------------------------------------------------------------------------- helpers
def _num_tensorcores():
    """Best-effort TensorCores-per-device (v7x / v4 / v5p expose 2, else 1)."""
    try:
        kind = jax.devices()[0].device_kind.lower()
    except Exception:
        return 1
    return 2 if any(t in kind for t in ("v7", "v4", "v5p", "v5 p")) else 1


def _vmem_capacity_bytes():
    """Generation-aware physical VMEM per core; conservative v7x fallback (64 MiB)."""
    try:
        cap = int(getattr(pltpu.get_tpu_info(), "vmem_capacity_bytes", 0))
        if cap > 0:
            return cap
    except Exception:
        pass
    return 64 * 2**20


def _pick_batch_tile(batch, c_in, two_d, *, max_rows=512, min_steps=1):
    """Largest divisor `bt` of `batch` keeping the fused intermediates MXU-friendly
    (bt*2d <= max_rows), the x slab sublane-aligned (bt*c_in % 8 == 0, or bt == batch
    so the block equals the full array), and — only on multi-TC chips — at least
    `min_steps` grid steps on the 'parallel' batch axis."""
    cands = [bt for bt in range(1, batch + 1)
             if batch % bt == 0 and ((bt * c_in) % 8 == 0 or bt == batch)]
    return max(cands, key=lambda bt: (bt * two_d <= max_rows,
                                      batch // bt >= min_steps, bt))


def _pick_node_tile(n, vmem_budget, cbytes):
    """Contraction tile for the (N, N) A_hat.T operand: fully resident when its
    double-buffered block fits ~40% of VMEM, otherwise the largest 128-multiple
    divisor of N that does (avoids the large-N residency cliff on v7x)."""
    budget = 0.4 * vmem_budget
    if n % 128 != 0 or 2 * n * n * cbytes <= budget:
        return n
    best = 128
    for tk in range(128, n + 1, 128):
        if n % tk == 0 and 2 * tk * n * cbytes <= budget:
            best = tk
    return best


def _vmem_limit_bytes(bt, c_in, two_d, n, tk, d_model, cbytes, capacity):
    """Generous VMEM estimate, clamped to ~90% of the chip's physical VMEM."""
    f32, db, lane = 4, 2, 128
    pad = lambda v: max(v, lane)
    resident = (
        db * bt * c_in * tk * cbytes                      # x block
        + db * tk * n * cbytes                            # A_hat.T block (dominant)
        + db * n * pad(d_model) * cbytes                  # M
        + db * 2 * bt * two_d * pad(bt * c_in) * cbytes   # block-diag W1.T / W2.T
        + db * bt * two_d * lane * cbytes                 # b1 column (lane padded)
        + db * 2 * bt * c_in * pad(d_model) * f32         # B_out + out block
        + bt * c_in * n * f32                             # xa accumulator scratch
    )
    live = (bt * two_d + 2 * bt * c_in) * n * f32         # h / g / xa live values
    est = 2 * (resident + live)                           # slack for padding / regalloc
    return int(min(max(est, 16 * 2**20), int(0.9 * capacity)))


# ----------------------------------------------------------------------------- wrapper
@functools.partial(jax.jit, static_argnames=("compute_dtype",))
def gcn_forward(x, a_hat, w1, b1, w2, b2, wl, bl, *, compute_dtype=jnp.bfloat16):
    """x: (B, c_in, N) f32 -> (B, c_in, d_model) f32.

    w1:(c_in,2d) b1:(1,2d) w2:(2d,c_in) b2:(1,c_in)   GCNConv weights (X @ W + b)
    wl:(d_model,N) bl:(1,d_model)                     nn.Linear(node, d_model)
    """
    B, c_in, N = x.shape
    two_d = w1.shape[1]
    d_model = wl.shape[0]

    cd = compute_dtype
    cbytes = jnp.dtype(cd).itemsize
    vmem_cap = _vmem_capacity_bytes()
    bt = _pick_batch_tile(B, c_in, two_d, min_steps=_num_tensorcores())
    tk = _pick_node_tile(N, vmem_cap, cbytes)

    # ---- one-time constant folding (tiny XLA ops outside the kernel) ---------------
    a_t = a_hat.T                                       # A_hat.T (== A_hat if undirected)
    wl_t = wl.T                                         # (N, d_model)
    m = jnp.matmul(a_t, wl_t, precision=jax.lax.Precision.HIGHEST)      # (N, d_model)
    col_sum = jnp.sum(wl_t, axis=0, keepdims=True)      # 1_N.T @ Wl.T   (1, d_model)
    b_out = b2.reshape(c_in, 1) @ col_sum + bl.reshape(1, d_model)       # (c_in, d_model)
    eye_bt = jnp.eye(bt, dtype=jnp.float32)
    w1bd = jnp.kron(eye_bt, w1.T)                       # block-diag, (bt*2d, bt*c_in)
    w2bd = jnp.kron(eye_bt, w2.T)                       # block-diag, (bt*c_in, bt*2d)
    b1_tile = jnp.tile(b1.reshape(two_d, 1), (bt, 1))   # (bt*2d, 1)
    bout_tile = jnp.tile(b_out, (bt, 1))                # (bt*c_in, d_model) f32

    x_flat = x.reshape(B * c_in, N).astype(cd)          # feature-major, batch-fused rows
    a_c, m_c = a_t.astype(cd), m.astype(cd)
    w1bd_c, w2bd_c, b1_c = w1bd.astype(cd), w2bd.astype(cd), b1_tile.astype(cd)

    # Grid-invariant operands use constant index maps, so they are only DMA'd once.
    # TODO(synk): pin them single-buffered (pipeline_mode=pl.Buffered(1)) to halve their
    # VMEM footprint once single-buffering is validated on the target toolchain.
    const = lambda i, k: (0, 0)

    out_flat = pl.pallas_call(
        _gcn_kernel,
        out_shape=jax.ShapeDtypeStruct((B * c_in, d_model), jnp.float32),
        grid_spec=pltpu.PrefetchScalarGridSpec(
            num_scalar_prefetch=0,
            grid=(B // bt, N // tk),
            in_specs=[
                pl.BlockSpec((bt * c_in, tk), lambda i, k: (i, k)),       # x (fused rows)
                pl.BlockSpec((tk, N), lambda i, k: (k, 0)),               # A_hat.T tile
                pl.BlockSpec((bt * two_d, bt * c_in), const),             # blkdiag W1.T
                pl.BlockSpec((bt * two_d, 1), const),                     # b1 (tiled)
                pl.BlockSpec((bt * c_in, bt * two_d), const),             # blkdiag W2.T
                pl.BlockSpec((N, d_model), const),                        # M
                pl.BlockSpec((bt * c_in, d_model), const),                # fused out bias
            ],
            out_specs=pl.BlockSpec((bt * c_in, d_model), lambda i, k: (i, 0)),
            scratch_shapes=[pltpu.VMEM((bt * c_in, N), jnp.float32)],
        ),
        compiler_params=pltpu.CompilerParams(
            dimension_semantics=("parallel", "arbitrary"),
            vmem_limit_bytes=_vmem_limit_bytes(bt, c_in, two_d, N, tk, d_model,
                                               cbytes, vmem_cap),
        ),
    )(x_flat, a_c, w1bd_c, b1_c, w2bd_c, m_c, bout_tile)
    # rows are (batch, c_in)-major, so a free reshape recovers (B, c_in, d_model)
    return out_flat.reshape(B, c_in, d_model)


# -------------------------------------------------------------------- reference / test
def normalized_adjacency(edge_index, num_nodes):
    """Dense A_hat = D^{-1/2} (A + I) D^{-1/2} from an edge_index array of shape (2, E)."""
    a = np.zeros((num_nodes, num_nodes), dtype=np.float32)
    src, dst = np.asarray(edge_index)
    a[dst, src] = 1.0                                   # message j -> i lands in row i
    a = a + np.eye(num_nodes, dtype=np.float32)         # self loops
    deg = a.sum(axis=1)
    d_inv_sqrt = 1.0 / np.sqrt(np.maximum(deg, 1e-12))
    a_hat = (d_inv_sqrt[:, None] * a) * d_inv_sqrt[None, :]
    return jnp.asarray(a_hat, dtype=jnp.float32)


def reference_forward(x, a_hat, w1, b1, w2, b2, wl, bl):
    """Pure-numpy float64 ground truth of the PyTorch forward (dropout = identity)."""
    f64 = lambda t: np.asarray(t, dtype=np.float64)
    x, a, w1, b1, w2, b2, wl, bl = map(f64, (x, a_hat, w1, b1, w2, b2, wl, bl))
    xp = np.transpose(x, (0, 2, 1))                     # (B, N, c_in)
    h = np.einsum("ij,bjf->bif", a, xp @ w1) + b1       # conv1
    h = np.where(h > 0, h, 0.01 * h)                    # leaky_relu
    y = np.einsum("ij,bjf->bif", a, h @ w2) + b2        # conv2
    y = np.transpose(y, (0, 2, 1))                      # (B, c_in, N)
    return y @ wl.T + bl                                # Linear(nodes -> d_model)


def _run_case(B, c_in, N, d_model, compute_dtype, rtol, atol):
    two_d = 2 * d_model
    # deterministic undirected ring graph over N nodes (node = edge.max() + 1 = N)
    src = np.arange(N)
    dst = (src + 1) % N
    edge_index = np.stack([np.concatenate([src, dst]),
                           np.concatenate([dst, src])], axis=0)
    a_hat = normalized_adjacency(edge_index, N)

    key = jax.random.PRNGKey(0)
    k_x, k_w1, k_b1, k_w2, k_b2, k_wl, k_bl = jax.random.split(key, 7)
    x = jax.random.normal(k_x, (B, c_in, N), dtype=jnp.float32)
    w1 = 0.1 * jax.random.normal(k_w1, (c_in, two_d), dtype=jnp.float32)
    b1 = 0.1 * jax.random.normal(k_b1, (1, two_d), dtype=jnp.float32)
    w2 = 0.1 * jax.random.normal(k_w2, (two_d, c_in), dtype=jnp.float32)
    b2 = 0.1 * jax.random.normal(k_b2, (1, c_in), dtype=jnp.float32)
    wl = 0.1 * jax.random.normal(k_wl, (d_model, N), dtype=jnp.float32)
    bl = 0.1 * jax.random.normal(k_bl, (1, d_model), dtype=jnp.float32)

    out = jax.block_until_ready(
        gcn_forward(x, a_hat, w1, b1, w2, b2, wl, bl, compute_dtype=compute_dtype))
    ref = reference_forward(x, a_hat, w1, b1, w2, b2, wl, bl)
    assert out.shape == (B, c_in, d_model), out.shape
    np.testing.assert_allclose(np.asarray(out, np.float64), ref, rtol=rtol, atol=atol)


if __name__ == "__main__":
    # module-implied small config: B=2, c_in=4, N=16 nodes, d_model=8 (2*d_model=16)
    _run_case(B=2, c_in=4, N=16, d_model=8, compute_dtype=jnp.float32,
              rtol=1e-2, atol=1e-2)      # f32 path (algebra check)
    _run_case(B=2, c_in=4, N=16, d_model=8, compute_dtype=jnp.bfloat16,
              rtol=2e-2, atol=2e-2)      # bf16 MXU-operand path
    # larger batch exercises batch fusion (bt=4 or 8 -> single fused A_hat matmul/step)
    _run_case(B=8, c_in=4, N=32, d_model=16, compute_dtype=jnp.bfloat16,
              rtol=2e-2, atol=2e-2)
    print("KERNEL_OK")
</pallas_src>

<mosaic_0001>
module attributes {stable_mosaic.version = 11 : i64} {
  func.func @_gcn_kernel(%arg0: i32, %arg1: i32, %arg2: memref<8x16xf32, #tpu.memory_space<vmem>>, %arg3: memref<16x16xf32, #tpu.memory_space<vmem>>, %arg4: memref<32x8xf32, #tpu.memory_space<vmem>>, %arg5: memref<32x1xf32, #tpu.memory_space<vmem>>, %arg6: memref<8x32xf32, #tpu.memory_space<vmem>>, %arg7: memref<16x8xf32, #tpu.memory_space<vmem>>, %arg8: memref<8x8xf32, #tpu.memory_space<vmem>>, %arg9: memref<8x8xf32, #tpu.memory_space<vmem>>, %arg10: memref<8x16xf32, #tpu.memory_space<vmem>>) attributes {dimension_semantics = [#tpu.dimension_semantics<parallel>, #tpu.dimension_semantics<arbitrary>], iteration_bounds = array<i64: 1, 1>, scalar_prefetch = 0 : i64, scratch_operands = 1 : i64, tpu.core_type = #tpu.core_type<tc>, window_params = [{transform_indices = @transform_0, window_bounds = array<i64: 8, 16>}, {transform_indices = @transform_1, window_bounds = array<i64: 16, 16>}, {pipeline_mode = #tpu.pipeline_mode<synchronous>, transform_indices = @transform_2, window_bounds = array<i64: 32, 8>}, {pipeline_mode = #tpu.pipeline_mode<synchronous>, transform_indices = @transform_3, window_bounds = array<i64: 32, 1>}, {pipeline_mode = #tpu.pipeline_mode<synchronous>, transform_indices = @transform_4, window_bounds = array<i64: 8, 32>}, {pipeline_mode = #tpu.pipeline_mode<synchronous>, transform_indices = @transform_5, window_bounds = array<i64: 16, 8>}, {pipeline_mode = #tpu.pipeline_mode<synchronous>, transform_indices = @transform_6, window_bounds = array<i64: 8, 8>}, {transform_indices = @transform_7, window_bounds = array<i64: 8, 8>}]} {
    %c0_i32 = arith.constant 0 : i32
    %0 = arith.cmpi eq, %arg1, %c0_i32 : i32
    %1 = arith.extui %0 : i1 to i32
    %c0_i32_0 = arith.constant 0 : i32
    %2 = arith.cmpi ne, %1, %c0_i32_0 : i32
    scf.if %2 {
      %cst_10 = arith.constant 0.000000e+00 : f32
      %12 = vector.broadcast %cst_10 : f32 to vector<8x16xf32>
      %c0_11 = arith.constant 0 : index
      %c0_12 = arith.constant 0 : index
      %13 = vector.load %arg10[%c0_11, %c0_12] : memref<8x16xf32, #tpu.memory_space<vmem>>, vector<8x16xf32>
      tpu.vector_store %arg10[%c0_11, %c0_12], %12 {strides = array<i32>} : memref<8x16xf32, #tpu.memory_space<vmem>>, vector<8x16xf32>,
    } else {
    }
    %c0 = arith.constant 0 : index
    %c0_1 = arith.constant 0 : index
    %3 = vector.load %arg10[%c0, %c0_1] : memref<8x16xf32, #tpu.memory_space<vmem>>, vector<8x16xf32>
    %c0_2 = arith.constant 0 : index
    %c0_3 = arith.constant 0 : index
    %4 = vector.load %arg2[%c0_2, %c0_3] : memref<8x16xf32, #tpu.memory_space<vmem>>, vector<8x16xf32>
    %c0_4 = arith.constant 0 : index
    %c0_5 = arith.constant 0 : index
    %5 = vector.load %arg3[%c0_4, %c0_5] : memref<16x16xf32, #tpu.memory_space<vmem>>, vector<16x16xf32>
    %cst = arith.constant dense<0.000000e+00> : vector<8x16xf32>
    %6 = tpu.matmul %4, %5, %cst {dimension_numbers = #tpu.dot_dimension_numbers<[1], [0], [0], [1], [0, 0, 1, 1], [], []>} : vector<8x16xf32>, vector<16x16xf32>, vector<8x16xf32> -> vector<8x16xf32>
    %7 = arith.addf %3, %6 : vector<8x16xf32>
    %c0_6 = arith.constant 0 : index
    %c0_7 = arith.constant 0 : index
    %8 = vector.load %arg10[%c0_6, %c0_7] : memref<8x16xf32, #tpu.memory_space<vmem>>, vector<8x16xf32>
    tpu.vector_store %arg10[%c0_6, %c0_7], %7 {strides = array<i32>} : memref<8x16xf32, #tpu.memory_space<vmem>>, vector<8x16xf32>,
    %c0_i32_8 = arith.constant 0 : i32
    %9 = arith.cmpi eq, %arg1, %c0_i32_8 : i32
    %10 = arith.extui %9 : i1 to i32
    %c0_i32_9 = arith.constant 0 : i32
    %11 = arith.cmpi ne, %10, %c0_i32_9 : i32
    scf.if %11 {
      %c0_10 = arith.constant 0 : index
      %c0_11 = arith.constant 0 : index
      %12 = vector.load %arg10[%c0_10, %c0_11] : memref<8x16xf32, #tpu.memory_space<vmem>>, vector<8x16xf32>
      %c0_12 = arith.constant 0 : index
      %c0_13 = arith.constant 0 : index
      %13 = vector.load %arg4[%c0_12, %c0_13] : memref<32x8xf32, #tpu.memory_space<vmem>>, vector<32x8xf32>
      %cst_14 = arith.constant dense<0.000000e+00> : vector<32x16xf32>
      %14 = tpu.matmul %13, %12, %cst_14 {dimension_numbers = #tpu.dot_dimension_numbers<[1], [0], [0], [1], [0, 0, 1, 1], [], []>} : vector<32x8xf32>, vector<8x16xf32>, vector<32x16xf32> -> vector<32x16xf32>
      %c0_15 = arith.constant 0 : index
      %c0_16 = arith.constant 0 : index
      %15 = vector.load %arg5[%c0_15, %c0_16] : memref<32x1xf32, #tpu.memory_space<vmem>>, vector<32x1xf32>
      %16 = vector.broadcast %15 : vector<32x1xf32> to vector<32x16xf32>
      %17 = arith.addf %14, %16 : vector<32x16xf32>
      %cst_17 = arith.constant 0.000000e+00 : f32
      %18 = vector.broadcast %cst_17 : f32 to vector<32x16xf32>
      %19 = arith.cmpf ogt, %17, %18 : vector<32x16xf32>
      %cst_18 = arith.constant 0.00999999977 : f32
      %20 = vector.broadcast %cst_18 : f32 to vector<32x16xf32>
      %21 = arith.mulf %20, %17 : vector<32x16xf32>
      %22 = arith.select %19, %17, %21 : vector<32x16xi1>, vector<32x16xf32>
      %c0_19 = arith.constant 0 : index
      %c0_20 = arith.constant 0 : index
      %23 = vector.load %arg6[%c0_19, %c0_20] : memref<8x32xf32, #tpu.memory_space<vmem>>, vector<8x32xf32>
      %cst_21 = arith.constant dense<0.000000e+00> : vector<8x16xf32>
      %24 = tpu.matmul %23, %22, %cst_21 {dimension_numbers = #tpu.dot_dimension_numbers<[1], [0], [0], [1], [0, 0, 1, 1], [], []>} : vector<8x32xf32>, vector<32x16xf32>, vector<8x16xf32> -> vector<8x16xf32>
      %c0_22 = arith.constant 0 : index
      %c0_23 = arith.constant 0 : index
      %25 = vector.load %arg7[%c0_22, %c0_23] : memref<16x8xf32, #tpu.memory_space<vmem>>, vector<16x8xf32>
      %cst_24 = arith.constant dense<0.000000e+00> : vector<8x8xf32>
      %26 = tpu.matmul %24, %25, %cst_24 {dimension_numbers = #tpu.dot_dimension_numbers<[1], [0], [0], [1], [0, 0, 1, 1], [], []>} : vector<8x16xf32>, vector<16x8xf32>, vector<8x8xf32> -> vector<8x8xf32>
      %c0_25 = arith.constant 0 : index
      %c0_26 = arith.constant 0 : index
      %27 = vector.load %arg8[%c0_25, %c0_26] : memref<8x8xf32, #tpu.memory_space<vmem>>, vector<8x8xf32>
      %28 = arith.addf %26, %27 : vector<8x8xf32>
      %c0_27 = arith.constant 0 : index
      %c0_28 = arith.constant 0 : index
      %29 = vector.load %arg9[%c0_27, %c0_28] : memref<8x8xf32, #tpu.memory_space<vmem>>, vector<8x8xf32>
      tpu.vector_store %arg9[%c0_27, %c0_28], %28 {strides = array<i32>} : memref<8x8xf32, #tpu.memory_space<vmem>>, vector<8x8xf32>,
    } else {
    }
    return
  }
  func.func @transform_0(%arg0: i32, %arg1: i32) -> (i32, i32) {
    %c0_i32 = arith.constant 0 : i32
    return %arg0, %arg1 : i32, i32
  }
  func.func @transform_1(%arg0: i32, %arg1: i32) -> (i32, i32) {
    %c0_i32 = arith.constant 0 : i32
    %c0_i32_0 = arith.constant 0 : i32
    return %arg1, %c0_i32 : i32, i32
  }
  func.func @transform_2(%arg0: i32, %arg1: i32) -> (i32, i32) {
    %c0_i32 = arith.constant 0 : i32
    %c0_i32_0 = arith.constant 0 : i32
    %c0_i32_1 = arith.constant 0 : i32
    return %c0_i32, %c0_i32_0 : i32, i32
  }
  func.func @transform_3(%arg0: i32, %arg1: i32) -> (i32, i32) {
    %c0_i32 = arith.constant 0 : i32
    %c0_i32_0 = arith.constant 0 : i32
    %c0_i32_1 = arith.constant 0 : i32
    return %c0_i32, %c0_i32_0 : i32, i32
  }
  func.func @transform_4(%arg0: i32, %arg1: i32) -> (i32, i32) {
    %c0_i32 = arith.constant 0 : i32
    %c0_i32_0 = arith.constant 0 : i32
    %c0_i32_1 = arith.constant 0 : i32
    return %c0_i32, %c0_i32_0 : i32, i32
  }
  func.func @transform_5(%arg0: i32, %arg1: i32) -> (i32, i32) {
    %c0_i32 = arith.constant 0 : i32
    %c0_i32_0 = arith.constant 0 : i32
    %c0_i32_1 = arith.constant 0 : i32
    return %c0_i32, %c0_i32_0 : i32, i32
  }
  func.func @transform_6(%arg0: i32, %arg1: i32) -> (i32, i32) {
    %c0_i32 = arith.constant 0 : i32
    %c0_i32_0 = arith.constant 0 : i32
    %c0_i32_1 = arith.constant 0 : i32
    return %c0_i32, %c0_i32_0 : i32, i32
  }
  func.func @transform_7(%arg0: i32, %arg1: i32) -> (i32, i32) {
    %c0_i32 = arith.constant 0 : i32
    %c0_i32_0 = arith.constant 0 : i32
    return %arg0, %c0_i32 : i32, i32
  }
}

</mosaic_0001>

<llo_original>
// kernel: gcn_forward.1
$region0: #{gcn_forward.1}
  #allocation0 [shape = 'u32[]', space=smem, size = 0x4, offset = 0x4, fixed_abs, tag = 'smem constant byte address 0x4 - core index']
  #allocation1 [shape = 'u32[72,128]{1,0:T(1,128)}', space=vmem, size = 0x9000, scoped, tag = 'internal scratch']
  #allocation2 [shape = 'f32[8,16]{1,0:T(8,128)}', space=vmem, size = 0x1000, scoped, tag = 'scratch operand']
  %s0 = inlined_call_operand.vmem [shape: f32[8,16], index: 0, kind: input, shape index: {}]
  %s1 = inlined_call_operand.vmem [shape: f32[16,16], index: 1, kind: input, shape index: {}]
  %s2 = inlined_call_operand.vmem [shape: f32[32,8], index: 2, kind: input, shape index: {}]
  %s3 = inlined_call_operand.vmem [shape: f32[32,1], index: 3, kind: input, shape index: {}]
  %s4 = inlined_call_operand.vmem [shape: f32[8,32], index: 4, kind: input, shape index: {}]
  %s5 = inlined_call_operand.vmem [shape: f32[16,8], index: 5, kind: input, shape index: {}]
  %s6 = inlined_call_operand.vmem [shape: f32[8,8], index: 6, kind: input, shape index: {}]
  %s7 = inlined_call_operand.hbm [shape: f32[8,8], index: 7, kind: output, shape index: {}]
  %s8 = sld [smem:[#allocation0]]
  $region46: #{gcn_forward.1} parent=0
    _
  %s10 = ssub.s32 1, %s8
  %s11 = scalar_select 0, %s10, %s8
  $region1: #{gcn_forward.1} parent=0
    #allocation3 [shape = 'u8[4096]{0}', space=vmem, size = 0x1000, scoped, tag = 'output window, operand 0, single buffered']
    #allocation4 [shape = 's32[1]{0}', space=sflag, size = 0x4, scoped, tag = 'scoped memory for gcn_forward.1']
    %12 = vsyncpa [#allocation4], 0
    // Predicated region
    $region2: #{gcn_forward.1} parent=1 // pred_check
      _
    $region3: #{gcn_forward.1} parent=1 // pred_check_branch
      %14 = sbr.rel (0) target = $region5
    $region4: #{gcn_forward.1} parent=1 // pred_region
      _
    $region5: #{gcn_forward.1} parent=1 // pred_fallthru
      _
    // Predicated region
    $region6: #{gcn_forward.1} parent=1 // pred_check
      _
    $region7: #{gcn_forward.1} parent=1 // pred_check_branch
      %16 = sbr.rel (0) target = $region9
    $region8: #{gcn_forward.1} parent=1 // pred_region
      _
    $region9: #{gcn_forward.1} parent=1 // pred_fallthru
      _
    // Predicated region
    $region10: #{gcn_forward.1} parent=1 // pred_check
      _
    $region11: #{gcn_forward.1} parent=1 // pred_check_branch
      %18 = sbr.rel (0) target = $region13
    $region12: #{gcn_forward.1} parent=1 // pred_region
      _
    $region13: #{gcn_forward.1} parent=1 // pred_fallthru
      _
    // Predicated region
    $region14: #{gcn_forward.1} parent=1 // pred_check
      _
    $region15: #{gcn_forward.1} parent=1 // pred_check_branch
      %20 = sbr.rel (0) target = $region17
    $region16: #{gcn_forward.1} parent=1 // pred_region
      _
    $region17: #{gcn_forward.1} parent=1 // pred_fallthru
      _
    // Predicated region
    $region18: #{gcn_forward.1} parent=1 // pred_check
      _
    $region19: #{gcn_forward.1} parent=1 // pred_check_branch
      %22 = sbr.rel (0) target = $region21
    $region20: #{gcn_forward.1} parent=1 // pred_region
      _
    $region21: #{gcn_forward.1} parent=1 // pred_fallthru
      _
    // Predicated region
    $region22: #{gcn_forward.1} parent=1 // pred_check
      _
    $region23: #{gcn_forward.1} parent=1 // pred_check_branch
      %24 = sbr.rel (0) target = $region25
    $region24: #{gcn_forward.1} parent=1 // pred_region
      _
    $region25: #{gcn_forward.1} parent=1 // pred_fallthru
      _
    // Predicated region
    $region26: #{gcn_forward.1} parent=1 // pred_check
      _
    $region27: #{gcn_forward.1} parent=1 // pred_check_branch
      %26 = sbr.rel (0) target = $region29
    $region28: #{gcn_forward.1} parent=1 // pred_region
      _
    $region29: #{gcn_forward.1} parent=1 // pred_fallthru
      _
    %p27 = scmp.eq.s32.totalorder 0, 0
    // Predicated region
    $region30: #{gcn_forward.1} parent=1 // pred_check
      %p28 = pneg %p27
    $region31: #{gcn_forward.1} parent=1 // pred_check_branch
      %30 = sbr.rel (%p28) target = $region33
    $region32: #{gcn_forward.1} parent=1 // pred_region
      %vm31 = vcmask 130048
      %32 = vst.msk [vmem:[#allocation2] sm:$0xff] %vm31, 0.0
    $region33: #{gcn_forward.1} parent=1 // pred_fallthru
      _
    %v33 = vld [vmem:[#allocation2] sm:$0xff]
    %v34 = vld [vmem:[%s0] sm:$0xff]
    %v35 = vld [vmem:[%s1] sm:$0xff]
    %v36 = vld [vmem:[%s1 + $0x8] sm:$0xff]
    %vm37 = vcmask 130048
    %v39 = vsel %vm37, %v34, 0
    %41 = vmatpush.msra.mxu0 0.0
    %42 = vmatpush.msra.mxu0 0.0
    %43 = vmatpush.msra.mxu0 0.0
    %44 = vmatpush.msra.mxu0 0.0
    %45 = vmatpush.msra.mxu0 0.0
    %46 = vmatpush.msra.mxu0 0.0
    %47 = vmatpush.msra.mxu0 0.0
    %48 = vmatpush.msra.mxu0 0.0
    %49 = vmatpush.msra.mxu0 0.0
    %50 = vmatpush.msra.mxu0 0.0
    %51 = vmatpush.msra.mxu0 0.0
    %52 = vmatpush.msra.mxu0 0.0
    %53 = vmatpush.msra.mxu0 0.0
    %54 = vmatpush.msra.mxu0 0.0
    %55 = vmatpush.msra.mxu0 %v36
    %56 = vmatpush.msra.mxu0 %v35
    %57 = vmatmul.f32.gmra.mxu0 %v39
    %v58 = vpop.f32.mrf.mxu0
    %v59 = vadd.f32 0.0, %v58
    %60 = vdwg.mxu0
    %v61 = vadd.f32 %v33, %v59
    %62 = vst.msk [vmem:[#allocation2] sm:$0xff] %vm37, %v61
    // Predicated region
    $region34: #{gcn_forward.1} parent=1 // pred_check
      %p63 = pneg %p27
    $region35: #{gcn_forward.1} parent=1 // pred_check_branch
      %65 = sbr.rel (%p63) target = $region37
    $region36: #{gcn_forward.1} parent=1 // pred_region
      %v66 = vld [vmem:[#allocation2] sm:$0xff]
      %v67 = vld [vmem:[%s2] sm:$0xff]
      %v68 = vld [vmem:[%s2 + $0x8] sm:$0xff]
      %v69 = vld [vmem:[%s2 + $0x10] sm:$0xff]
      %v70 = vld [vmem:[%s2 + $0x18] sm:$0xff]
      %v71 = vld [vmem:[%s3] sm:$0xff]
      %v72 = vld [vmem:[%s3 + $0x8] sm:$0xff]
      %v73 = vld [vmem:[%s3 + $0x10] sm:$0xff]
      %v74 = vld [vmem:[%s3 + $0x18] sm:$0xff]
      %76 = vset.pattern.permute.xlu0 0
      %77 = vperm.xlu0 %76, %v71
      %v78 = vpop.permute.xlu0 %77
      %81 = vset.pattern.permute.xlu0 0
      %82 = vperm.xlu0 %81, %v72
      %v83 = vpop.permute.xlu0 %82
      %86 = vset.pattern.permute.xlu0 0
      %87 = vperm.xlu0 %86, %v73
      %v88 = vpop.permute.xlu0 %87
      %91 = vset.pattern.permute.xlu0 0
      %92 = vperm.xlu0 %91, %v74
      %v93 = vpop.permute.xlu0 %92
      %vm95 = vcmask 64512
      %v97 = vsel %vm95, %v67, 0
      %v100 = vsel %vm95, %v68, 0
      %v103 = vsel %vm95, %v69, 0
      %v106 = vsel %vm95, %v70, 0
      %108 = vmatpush.msra.mxu0 0.0
      %109 = vmatpush.msra.mxu0 0.0
      %110 = vmatpush.msra.mxu0 0.0
      %111 = vmatpush.msra.mxu0 0.0
      %112 = vmatpush.msra.mxu0 0.0
      %113 = vmatpush.msra.mxu0 0.0
      %114 = vmatpush.msra.mxu0 0.0
      %115 = vmatpush.msra.mxu0 0.0
      %116 = vmatpush.msra.mxu0 0.0
      %117 = vmatpush.msra.mxu0 0.0
      %118 = vmatpush.msra.mxu0 0.0
      %119 = vmatpush.msra.mxu0 0.0
      %120 = vmatpush.msra.mxu0 0.0
      %121 = vmatpush.msra.mxu0 0.0
      %122 = vmatpush.msra.mxu0 0.0
      %123 = vmatpush.msra.mxu0 %v66
      %124 = vmatmul.f32.gmra.mxu0 %v97
      %v125 = vpop.f32.mrf.mxu0
      %v126 = vadd.f32 %v78, %v125
      %127 = vmatmul.f32.gmra.mxu0 %v100
      %v128 = vpop.f32.mrf.mxu0
      %v129 = vadd.f32 %v83, %v128
      %130 = vmatmul.f32.gmra.mxu0 %v103
      %v131 = vpop.f32.mrf.mxu0
      %v132 = vadd.f32 %v88, %v131
      %133 = vmatmul.f32.gmra.mxu0 %v106
      %v134 = vpop.f32.mrf.mxu0
      %v135 = vadd.f32 %v93, %v134
      %136 = vdwg.mxu0
      %vm137 = vcmp.gt.f32.partialorder %v126, 0.0
      %vm138 = vcmp.gt.f32.partialorder %v129, 0.0
      %vm139 = vcmp.gt.f32.partialorder %v132, 0.0
      %vm140 = vcmp.gt.f32.partialorder %v135, 0.0
      %v141 = vmul.f32 %v126, 0.01
      %v142 = vmul.f32 %v129, 0.01
      %v143 = vmul.f32 %v132, 0.01
      %v144 = vmul.f32 %v135, 0.01
      %v145 = vsel %vm137, %v126, %v141
      %v146 = vsel %vm138, %v129, %v142
      %v147 = vsel %vm139, %v132, %v143
      %v148 = vsel %vm140, %v135, %v144
      %v149 = vld [vmem:[%s4] sm:$0xff]
      %vm150 = vcmask 261120
      %v152 = vsel %vm150, %v149, 0
      %154 = vmatpush.msra.mxu0 0.0
      %155 = vmatpush.msra.mxu0 0.0
      %156 = vmatpush.msra.mxu0 0.0
      %157 = vmatpush.msra.mxu0 0.0
      %158 = vmatpush.msra.mxu0 0.0
      %159 = vmatpush.msra.mxu0 0.0
      %160 = vmatpush.msra.mxu0 0.0
      %161 = vmatpush.msra.mxu0 0.0
      %162 = vmatpush.msra.mxu0 0.0
      %163 = vmatpush.msra.mxu0 0.0
      %164 = vmatpush.msra.mxu0 0.0
      %165 = vmatpush.msra.mxu0 0.0
      %166 = vmatpush.msra.mxu0 %v148
      %167 = vmatpush.msra.mxu0 %v147
      %168 = vmatpush.msra.mxu0 %v146
      %169 = vmatpush.msra.mxu0 %v145
      %170 = vmatmul.f32.gmra.mxu0 %v152
      %v171 = vpop.f32.mrf.mxu0
      %v172 = vadd.f32 0.0, %v171
      %173 = vdwg.mxu0
      %v174 = vld [vmem:[%s5] sm:$0xff]
      %v175 = vld [vmem:[%s5 + $0x8] sm:$0xff]
      %v176 = vld [vmem:[%s6] sm:$0xff]
      %v178 = vsel %vm37, %v172, 0
      %180 = vmatpush.msra.mxu0 0.0
      %181 = vmatpush.msra.mxu0 0.0
      %182 = vmatpush.msra.mxu0 0.0
      %183 = vmatpush.msra.mxu0 0.0
      %184 = vmatpush.msra.mxu0 0.0
      %185 = vmatpush.msra.mxu0 0.0
      %186 = vmatpush.msra.mxu0 0.0
      %187 = vmatpush.msra.mxu0 0.0
      %188 = vmatpush.msra.mxu0 0.0
      %189 = vmatpush.msra.mxu0 0.0
      %190 = vmatpush.msra.mxu0 0.0
      %191 = vmatpush.msra.mxu0 0.0
      %192 = vmatpush.msra.mxu0 0.0
      %193 = vmatpush.msra.mxu0 0.0
      %194 = vmatpush.msra.mxu0 %v175
      %195 = vmatpush.msra.mxu0 %v174
      %196 = vmatmul.f32.gmra.mxu0 %v178
      %v197 = vpop.f32.mrf.mxu0
      %v198 = vadd.f32 %v176, %v197
      %199 = vdwg.mxu0
      %200 = vst.msk [vmem:[#allocation3] sm:$0xff] %vm95, %v198
    $region37: #{gcn_forward.1} parent=1 // pred_fallthru
      _
    // Predicated region
    $region38: #{gcn_forward.1} parent=1 // pred_check
      _
    $region39: #{gcn_forward.1} parent=1 // pred_check_branch
      %202 = sbr.rel (0) target = $region41
    $region40: #{gcn_forward.1} parent=1 // pred_region
      %204 = vsyncadd [#allocation4], 0
      %s206 = sshll.u32 [#allocation3], 4
      %s207 = int_to_ptr.vmem [resolvable:$true] %s206
      %s208 = sshll.u32 %s7, 4
      %s209 = int_to_ptr.hbm [resolvable:$true] %s208
      %211 = dma.vmem_to_hbm [thread:$0]  %s207, 128, %s209, [#allocation4]
    $region41: #{gcn_forward.1} parent=1 // pred_fallthru
      _
    // Predicated region
    $region42: #{gcn_forward.1} parent=1 // pred_check
      _
    $region43: #{gcn_forward.1} parent=1 // pred_check_branch
      %213 = sbr.rel (0) target = $region45
    $region44: #{gcn_forward.1} parent=1 // pred_region
      %215 = dma.done [#allocation4], 128
    $region45: #{gcn_forward.1} parent=1 // pred_fallthru
      _
    %216 = vsyncpa [#allocation4], 1

</llo_original>
